<compile_context>
chip_gen: v5e
topology: v5e:2x2
jax: 0.10.0
libtpu: 0.0.40
codegen_flags: <defaults>
</compile_context>

<pallas_src>
import functools

import jax
import jax.numpy as jnp
from jax import lax
from jax.experimental import pallas as pl
from jax.experimental.pallas import tpu as pltpu


# ----------------------------------------------------------------------------
# Helpers
# ----------------------------------------------------------------------------
def _round_up(x, m):
    return ((x + m - 1) // m) * m


@functools.lru_cache(maxsize=None)
def _vmem_limit_bytes():
    """~75% of physical VMEM (48 MiB on v7x, 96 MiB on v5e/v6e)."""
    cap = 0
    try:
        cap = int(getattr(pltpu.get_tpu_info(), "vmem_capacity_bytes", 0))
    except Exception:
        cap = 0
    if cap <= 0:
        cap = 64 * 1024 * 1024  # conservative: v7x physical VMEM
    return int(cap * 3 // 4)


def _compiler_params():
    return pltpu.CompilerParams(
        dimension_semantics=("parallel",),
        vmem_limit_bytes=_vmem_limit_bytes())


# ----------------------------------------------------------------------------
# Pallas kernel: direct 3x3 conv (+ folded-BN bias) (+ ReLU)
#   x_ref : (P, L, Cin)   P=1 (stride-1: flattened padded image) or
#                         P=4 (stride-2: flattened parity planes), L has a
#                         trailing zero guard so every tap slice is in bounds.
#   w_ref : (9, Cin, Cout)  BN-scale folded, VMEM-resident across the grid.
#   b_ref : (1, Cout)
#   o_ref : (1, mrows, Cout)  output on the padded / parity pixel grid.
# ----------------------------------------------------------------------------
def _conv3x3_kernel(x_ref, w_ref, b_ref, o_ref, *, mrows, offsets, relu):
    cout = o_ref.shape[-1]
    acc = jnp.zeros((mrows, cout), jnp.float32)
    for t, (plane, off) in enumerate(offsets):
        win = x_ref[plane, off:off + mrows, :]             # (mrows, Cin) bf16
        acc = acc + jnp.dot(win, w_ref[t],
                            preferred_element_type=jnp.float32)
    y = acc + b_ref[...]
    if relu:
        y = jnp.maximum(y, 0.0)
    o_ref[0] = y.astype(o_ref.dtype)


def conv3x3_bn(x, w_hwio, scale, bias, *, stride, relu):
    """Fused 3x3 conv (pad=1) + BN affine (+ ReLU). NHWC -> NHWC bf16."""
    n, h, w, cin = x.shape
    cout = w_hwio.shape[-1]
    ho = (h + 2 - 3) // stride + 1
    wo = (w + 2 - 3) // stride + 1

    xb = x.astype(jnp.bfloat16)
    wf = (w_hwio.astype(jnp.float32) * scale.reshape(1, 1, 1, -1)
          ).astype(jnp.bfloat16).reshape(9, cin, cout)
    b2 = bias.reshape(1, cout).astype(jnp.float32)

    if stride == 1:
        hp, wp = h + 2, w + 2
        xp = jnp.pad(xb, ((0, 0), (1, 1), (1, 1), (0, 0)))
        mrows = hp * wp
        guard = 2 * wp + 2                     # max tap offset + 1 row slack
        xf = jnp.pad(xp.reshape(n, mrows, cin), ((0, 0), (0, guard), (0, 0)))
        x_spec = pl.BlockSpec((1, mrows + guard, cin), lambda i: (i, 0, 0))
        offsets = tuple((0, dy * wp + dx)
                        for dy in range(3) for dx in range(3))
        gh, gw = hp, wp
    else:  # stride == 2: space-to-depth into 4 parity planes
        hp, wp = _round_up(h + 2, 2), _round_up(w + 2, 2)
        xp = jnp.pad(xb, ((0, 0), (1, hp - h - 1), (1, wp - w - 1), (0, 0)))
        hq, wq = hp // 2, wp // 2
        phases = xp.reshape(n, hq, 2, wq, 2, cin).transpose(0, 2, 4, 1, 3, 5)
        mrows = hq * wq
        guard = wq + 1
        xf = jnp.pad(phases.reshape(n * 4, mrows, cin),
                     ((0, 0), (0, guard), (0, 0)))
        x_spec = pl.BlockSpec((4, mrows + guard, cin), lambda i: (i, 0, 0))
        offsets = tuple(((dy % 2) * 2 + (dx % 2), (dy // 2) * wq + (dx // 2))
                        for dy in range(3) for dx in range(3))
        gh, gw = hq, wq

    kernel = functools.partial(_conv3x3_kernel, mrows=mrows,
                               offsets=offsets, relu=relu)
    y = pl.pallas_call(
        kernel,
        out_shape=jax.ShapeDtypeStruct((n, mrows, cout), jnp.bfloat16),
        grid=(n,),
        in_specs=[x_spec,
                  pl.BlockSpec((9, cin, cout), lambda i: (0, 0, 0)),  # resident
                  pl.BlockSpec((1, cout), lambda i: (0, 0))],          # resident
        out_specs=pl.BlockSpec((1, mrows, cout), lambda i: (i, 0, 0)),
        compiler_params=_compiler_params(),
    )(xf, wf, b2)

    # Valid interior = top-left ho x wo of the padded / parity grid.
    return y.reshape(n, gh, gw, cout)[:, :ho, :wo, :]


# ----------------------------------------------------------------------------
# Pallas kernel: 1x1 conv (+ folded-BN bias) as a flat matmul, weights resident
# ----------------------------------------------------------------------------
def _pointwise_kernel(x_ref, w_ref, b_ref, o_ref, *, relu):
    y = jnp.dot(x_ref[...], w_ref[...],
                preferred_element_type=jnp.float32) + b_ref[...]
    if relu:
        y = jnp.maximum(y, 0.0)
    o_ref[...] = y.astype(o_ref.dtype)


def _pick_tm(m):
    if m >= 1024:
        return 512
    if m >= 512:
        return 256
    if m >= 256:
        return 128
    return max(8, _round_up(m, 8))


def conv1x1_bn(x, w_hwio, scale, bias, *, stride, relu):
    n, h, w, cin = x.shape
    cout = w_hwio.shape[-1]
    if stride != 1:
        x = x[:, ::stride, ::stride, :]
    ho, wo = x.shape[1], x.shape[2]

    xf = x.reshape(n * ho * wo, cin).astype(jnp.bfloat16)
    wf = (w_hwio.reshape(cin, cout).astype(jnp.float32)
          * scale.reshape(1, cout)).astype(jnp.bfloat16)
    b2 = bias.reshape(1, cout).astype(jnp.float32)

    m = xf.shape[0]
    tm = _pick_tm(m)
    m_pad = _round_up(m, tm)
    if m_pad != m:
        xf = jnp.pad(xf, ((0, m_pad - m), (0, 0)))

    y = pl.pallas_call(
        functools.partial(_pointwise_kernel, relu=relu),
        out_shape=jax.ShapeDtypeStruct((m_pad, cout), jnp.bfloat16),
        grid=(m_pad // tm,),
        in_specs=[pl.BlockSpec((tm, cin), lambda i: (i, 0)),
                  pl.BlockSpec((cin, cout), lambda i: (0, 0)),   # resident
                  pl.BlockSpec((1, cout), lambda i: (0, 0))],    # resident
        out_specs=pl.BlockSpec((tm, cout), lambda i: (i, 0)),
        compiler_params=_compiler_params(),
    )(xf, wf, b2)
    return y[:m].reshape(n, ho, wo, cout)


# ----------------------------------------------------------------------------
# Residual block / left_module forward (Pallas-backed)
# ----------------------------------------------------------------------------
def residual_forward(p, x, *, stride, out_channels):
    shortcut = x
    # Reproduce PyTorch's `inputs.shape[-1]` on NCHW == spatial width (quirk).
    in_channels = x.shape[2]
    h1 = conv3x3_bn(x, p["w1"], p["s1"], p["b1"], stride=stride, relu=True)
    if stride != 1 or in_channels != out_channels:
        shortcut = conv1x1_bn(shortcut, p["w3"], p["s3"], p["b3"],
                              stride=stride, relu=False)
    h2 = conv3x3_bn(h1, p["w2"], p["s2"], p["b2"], stride=1, relu=False)
    # Residual add + final ReLU fuse with the interior-slice epilogue in XLA.
    y = h2.astype(jnp.float32) + shortcut.astype(jnp.float32)
    return jnp.maximum(y, 0.0).astype(jnp.bfloat16)


def left_module_forward(params, x):
    outputs = [x]
    for stage in params:
        c = stage["c"]
        x = residual_forward(stage["res1"], x, stride=2, out_channels=c)
        x = residual_forward(stage["res2"], x, stride=1, out_channels=c)
        outputs.append(x)
    return outputs


# ----------------------------------------------------------------------------
# Deterministic parameter construction (BN folded to inference-mode affine)
# ----------------------------------------------------------------------------
def _bn_params(key, c):
    k1, k2 = jax.random.split(key)
    gamma = jax.random.uniform(k1, (c,), jnp.float32, 0.5, 1.5)
    beta = 0.1 * jax.random.normal(k2, (c,), jnp.float32)
    mean = jnp.zeros((c,), jnp.float32)
    var = jnp.ones((c,), jnp.float32)
    eps = 1e-5
    scale = gamma / jnp.sqrt(var + eps)
    bias = beta - mean * scale
    return scale, bias


def _residual_params(key, pre_c, c):
    ks = jax.random.split(key, 6)
    w1 = jax.random.normal(ks[0], (3, 3, pre_c, c), jnp.float32) / jnp.sqrt(9.0 * pre_c)
    s1, b1 = _bn_params(ks[1], c)
    w2 = jax.random.normal(ks[2], (3, 3, c, c), jnp.float32) / jnp.sqrt(9.0 * c)
    s2, b2 = _bn_params(ks[3], c)
    w3 = jax.random.normal(ks[4], (1, 1, pre_c, c), jnp.float32) / jnp.sqrt(1.0 * pre_c)
    s3, b3 = _bn_params(ks[5], c)
    return dict(w1=w1, s1=s1, b1=b1, w2=w2, s2=s2, b2=b2, w3=w3, s3=s3, b3=b3)


def init_left_module(key, pre_channel, dimension):
    stages = []
    pre_c = pre_channel
    for c in dimension:
        k1, k2, key = jax.random.split(key, 3)
        stages.append(dict(c=c,
                           res1=_residual_params(k1, pre_c, c),
                           res2=_residual_params(k2, c, c)))
        pre_c = c
    return stages


# ----------------------------------------------------------------------------
# Pure-JAX reference (lax.conv) with matching bf16 quantization / op order
# ----------------------------------------------------------------------------
def _conv_bn_ref(x, w, scale, bias, *, stride, pad, relu):
    xb = x.astype(jnp.bfloat16).astype(jnp.float32)
    ws = (w.astype(jnp.float32) * scale.reshape(1, 1, 1, -1)
          ).astype(jnp.bfloat16).astype(jnp.float32)
    y = lax.conv_general_dilated(
        xb, ws, (stride, stride), [(pad, pad), (pad, pad)],
        dimension_numbers=("NHWC", "HWIO", "NHWC"),
        precision=lax.Precision.HIGHEST)
    y = y + bias.reshape(1, 1, 1, -1)
    if relu:
        y = jnp.maximum(y, 0.0)
    return y.astype(jnp.bfloat16)


def _residual_ref(p, x, *, stride, out_channels):
    shortcut = x
    in_channels = x.shape[2]
    h1 = _conv_bn_ref(x, p["w1"], p["s1"], p["b1"], stride=stride, pad=1, relu=True)
    if stride != 1 or in_channels != out_channels:
        shortcut = _conv_bn_ref(shortcut, p["w3"], p["s3"], p["b3"],
                                stride=stride, pad=0, relu=False)
    h2 = _conv_bn_ref(h1, p["w2"], p["s2"], p["b2"], stride=1, pad=1, relu=False)
    y = h2.astype(jnp.float32) + shortcut.astype(jnp.float32)
    return jnp.maximum(y, 0.0).astype(jnp.bfloat16)


def left_module_forward_ref(params, x):
    outputs = [x]
    for stage in params:
        c = stage["c"]
        x = _residual_ref(stage["res1"], x, stride=2, out_channels=c)
        x = _residual_ref(stage["res2"], x, stride=1, out_channels=c)
        outputs.append(x)
    return outputs


# ----------------------------------------------------------------------------
if __name__ == "__main__":
    key = jax.random.PRNGKey(0)
    k_in, k_par = jax.random.split(key)

    # Small stand-in for left_module(pre_channel, dimension=(256,384,384,384,512))
    pre_channel = 4
    dimension = (8, 16, 32)

    x_nchw = jax.random.normal(k_in, (2, pre_channel, 16, 16), jnp.float32)
    x = jnp.transpose(x_nchw, (0, 2, 3, 1))  # NCHW -> NHWC

    params = init_left_module(k_par, pre_channel, dimension)

    outs = left_module_forward(params, x)      # [inputs, stage1, stage2, stage3]
    outs = jax.block_until_ready(outs)

    refs = left_module_forward_ref(params, x)
    refs = jax.block_until_ready(refs)

    for o, r in zip(outs, refs):
        assert o.shape == r.shape, (o.shape, r.shape)
        if not jnp.allclose(o.astype(jnp.float32), r.astype(jnp.float32),
                            rtol=2e-2, atol=2e-2):
            raise AssertionError("Pallas output mismatch vs reference")

    print("KERNEL_OK")
</pallas_src>

<mosaic_0001>
module attributes {stable_mosaic.version = 11 : i64} {
  func.func @_conv3x3_kernel(%arg0: i32, %arg1: memref<4x91x4xbf16, #tpu.memory_space<vmem>>, %arg2: memref<9x4x8xbf16, #tpu.memory_space<vmem>>, %arg3: memref<1x8xf32, #tpu.memory_space<vmem>>, %arg4: memref<1x81x8xbf16, #tpu.memory_space<vmem>>) attributes {dimension_semantics = [#tpu.dimension_semantics<parallel>], iteration_bounds = array<i64: 2>, scalar_prefetch = 0 : i64, scratch_operands = 0 : i64, tpu.core_type = #tpu.core_type<tc>, window_params = [{transform_indices = @transform_0, window_bounds = array<i64: 4, 91, 4>}, {pipeline_mode = #tpu.pipeline_mode<synchronous>, transform_indices = @transform_1, window_bounds = array<i64: 9, 4, 8>}, {pipeline_mode = #tpu.pipeline_mode<synchronous>, transform_indices = @transform_2, window_bounds = array<i64: 1, 8>}, {transform_indices = @transform_3, window_bounds = array<i64: 1, 81, 8>}]} {
    %cst = arith.constant 0.000000e+00 : f32
    %0 = vector.broadcast %cst : f32 to vector<81x8xf32>
    %c0 = arith.constant 0 : index
    %c0_0 = arith.constant 0 : index
    %c0_1 = arith.constant 0 : index
    %1 = vector.load %arg1[%c0, %c0_0, %c0_1] : memref<4x91x4xbf16, #tpu.memory_space<vmem>>, vector<1x81x4xbf16>
    %2 = vector.shape_cast %1 : vector<1x81x4xbf16> to vector<81x4xbf16>
    %c0_2 = arith.constant 0 : index
    %c0_3 = arith.constant 0 : index
    %c0_4 = arith.constant 0 : index
    %3 = vector.load %arg2[%c0_2, %c0_3, %c0_4] : memref<9x4x8xbf16, #tpu.memory_space<vmem>>, vector<1x4x8xbf16>
    %4 = vector.shape_cast %3 : vector<1x4x8xbf16> to vector<4x8xbf16>
    %cst_5 = arith.constant dense<0.000000e+00> : vector<81x8xf32>
    %5 = tpu.matmul %2, %4, %cst_5 {dimension_numbers = #tpu.dot_dimension_numbers<[1], [0], [0], [1], [0, 0, 1, 1], [], []>} : vector<81x4xbf16>, vector<4x8xbf16>, vector<81x8xf32> -> vector<81x8xf32>
    %6 = arith.addf %0, %5 : vector<81x8xf32>
    %c1 = arith.constant 1 : index
    %c0_6 = arith.constant 0 : index
    %c0_7 = arith.constant 0 : index
    %7 = vector.load %arg1[%c1, %c0_6, %c0_7] : memref<4x91x4xbf16, #tpu.memory_space<vmem>>, vector<1x81x4xbf16>
    %8 = vector.shape_cast %7 : vector<1x81x4xbf16> to vector<81x4xbf16>
    %c1_8 = arith.constant 1 : index
    %c0_9 = arith.constant 0 : index
    %c0_10 = arith.constant 0 : index
    %9 = vector.load %arg2[%c1_8, %c0_9, %c0_10] : memref<9x4x8xbf16, #tpu.memory_space<vmem>>, vector<1x4x8xbf16>
    %10 = vector.shape_cast %9 : vector<1x4x8xbf16> to vector<4x8xbf16>
    %cst_11 = arith.constant dense<0.000000e+00> : vector<81x8xf32>
    %11 = tpu.matmul %8, %10, %cst_11 {dimension_numbers = #tpu.dot_dimension_numbers<[1], [0], [0], [1], [0, 0, 1, 1], [], []>} : vector<81x4xbf16>, vector<4x8xbf16>, vector<81x8xf32> -> vector<81x8xf32>
    %12 = arith.addf %6, %11 : vector<81x8xf32>
    %c0_12 = arith.constant 0 : index
    %c1_13 = arith.constant 1 : index
    %c0_14 = arith.constant 0 : index
    %13 = vector.load %arg1[%c0_12, %c1_13, %c0_14] : memref<4x91x4xbf16, #tpu.memory_space<vmem>>, vector<1x81x4xbf16>
    %14 = vector.shape_cast %13 : vector<1x81x4xbf16> to vector<81x4xbf16>
    %c2 = arith.constant 2 : index
    %c0_15 = arith.constant 0 : index
    %c0_16 = arith.constant 0 : index
    %15 = vector.load %arg2[%c2, %c0_15, %c0_16] : memref<9x4x8xbf16, #tpu.memory_space<vmem>>, vector<1x4x8xbf16>
    %16 = vector.shape_cast %15 : vector<1x4x8xbf16> to vector<4x8xbf16>
    %cst_17 = arith.constant dense<0.000000e+00> : vector<81x8xf32>
    %17 = tpu.matmul %14, %16, %cst_17 {dimension_numbers = #tpu.dot_dimension_numbers<[1], [0], [0], [1], [0, 0, 1, 1], [], []>} : vector<81x4xbf16>, vector<4x8xbf16>, vector<81x8xf32> -> vector<81x8xf32>
    %18 = arith.addf %12, %17 : vector<81x8xf32>
    %c2_18 = arith.constant 2 : index
    %c0_19 = arith.constant 0 : index
    %c0_20 = arith.constant 0 : index
    %19 = vector.load %arg1[%c2_18, %c0_19, %c0_20] : memref<4x91x4xbf16, #tpu.memory_space<vmem>>, vector<1x81x4xbf16>
    %20 = vector.shape_cast %19 : vector<1x81x4xbf16> to vector<81x4xbf16>
    %c3 = arith.constant 3 : index
    %c0_21 = arith.constant 0 : index
    %c0_22 = arith.constant 0 : index
    %21 = vector.load %arg2[%c3, %c0_21, %c0_22] : memref<9x4x8xbf16, #tpu.memory_space<vmem>>, vector<1x4x8xbf16>
    %22 = vector.shape_cast %21 : vector<1x4x8xbf16> to vector<4x8xbf16>
    %cst_23 = arith.constant dense<0.000000e+00> : vector<81x8xf32>
    %23 = tpu.matmul %20, %22, %cst_23 {dimension_numbers = #tpu.dot_dimension_numbers<[1], [0], [0], [1], [0, 0, 1, 1], [], []>} : vector<81x4xbf16>, vector<4x8xbf16>, vector<81x8xf32> -> vector<81x8xf32>
    %24 = arith.addf %18, %23 : vector<81x8xf32>
    %c3_24 = arith.constant 3 : index
    %c0_25 = arith.constant 0 : index
    %c0_26 = arith.constant 0 : index
    %25 = vector.load %arg1[%c3_24, %c0_25, %c0_26] : memref<4x91x4xbf16, #tpu.memory_space<vmem>>, vector<1x81x4xbf16>
    %26 = vector.shape_cast %25 : vector<1x81x4xbf16> to vector<81x4xbf16>
    %c4 = arith.constant 4 : index
    %c0_27 = arith.constant 0 : index
    %c0_28 = arith.constant 0 : index
    %27 = vector.load %arg2[%c4, %c0_27, %c0_28] : memref<9x4x8xbf16, #tpu.memory_space<vmem>>, vector<1x4x8xbf16>
    %28 = vector.shape_cast %27 : vector<1x4x8xbf16> to vector<4x8xbf16>
    %cst_29 = arith.constant dense<0.000000e+00> : vector<81x8xf32>
    %29 = tpu.matmul %26, %28, %cst_29 {dimension_numbers = #tpu.dot_dimension_numbers<[1], [0], [0], [1], [0, 0, 1, 1], [], []>} : vector<81x4xbf16>, vector<4x8xbf16>, vector<81x8xf32> -> vector<81x8xf32>
    %30 = arith.addf %24, %29 : vector<81x8xf32>
    %c2_30 = arith.constant 2 : index
    %c1_31 = arith.constant 1 : index
    %c0_32 = arith.constant 0 : index
    %31 = vector.load %arg1[%c2_30, %c1_31, %c0_32] : memref<4x91x4xbf16, #tpu.memory_space<vmem>>, vector<1x81x4xbf16>
    %32 = vector.shape_cast %31 : vector<1x81x4xbf16> to vector<81x4xbf16>
    %c5 = arith.constant 5 : index
    %c0_33 = arith.constant 0 : index
    %c0_34 = arith.constant 0 : index
    %33 = vector.load %arg2[%c5, %c0_33, %c0_34] : memref<9x4x8xbf16, #tpu.memory_space<vmem>>, vector<1x4x8xbf16>
    %34 = vector.shape_cast %33 : vector<1x4x8xbf16> to vector<4x8xbf16>
    %cst_35 = arith.constant dense<0.000000e+00> : vector<81x8xf32>
    %35 = tpu.matmul %32, %34, %cst_35 {dimension_numbers = #tpu.dot_dimension_numbers<[1], [0], [0], [1], [0, 0, 1, 1], [], []>} : vector<81x4xbf16>, vector<4x8xbf16>, vector<81x8xf32> -> vector<81x8xf32>
    %36 = arith.addf %30, %35 : vector<81x8xf32>
    %c0_36 = arith.constant 0 : index
    %c9 = arith.constant 9 : index
    %c0_37 = arith.constant 0 : index
    %37 = vector.load %arg1[%c0_36, %c9, %c0_37] : memref<4x91x4xbf16, #tpu.memory_space<vmem>>, vector<1x81x4xbf16>
    %38 = vector.shape_cast %37 : vector<1x81x4xbf16> to vector<81x4xbf16>
    %c6 = arith.constant 6 : index
    %c0_38 = arith.constant 0 : index
    %c0_39 = arith.constant 0 : index
    %39 = vector.load %arg2[%c6, %c0_38, %c0_39] : memref<9x4x8xbf16, #tpu.memory_space<vmem>>, vector<1x4x8xbf16>
    %40 = vector.shape_cast %39 : vector<1x4x8xbf16> to vector<4x8xbf16>
    %cst_40 = arith.constant dense<0.000000e+00> : vector<81x8xf32>
    %41 = tpu.matmul %38, %40, %cst_40 {dimension_numbers = #tpu.dot_dimension_numbers<[1], [0], [0], [1], [0, 0, 1, 1], [], []>} : vector<81x4xbf16>, vector<4x8xbf16>, vector<81x8xf32> -> vector<81x8xf32>
    %42 = arith.addf %36, %41 : vector<81x8xf32>
    %c1_41 = arith.constant 1 : index
    %c9_42 = arith.constant 9 : index
    %c0_43 = arith.constant 0 : index
    %43 = vector.load %arg1[%c1_41, %c9_42, %c0_43] : memref<4x91x4xbf16, #tpu.memory_space<vmem>>, vector<1x81x4xbf16>
    %44 = vector.shape_cast %43 : vector<1x81x4xbf16> to vector<81x4xbf16>
    %c7 = arith.constant 7 : index
    %c0_44 = arith.constant 0 : index
    %c0_45 = arith.constant 0 : index
    %45 = vector.load %arg2[%c7, %c0_44, %c0_45] : memref<9x4x8xbf16, #tpu.memory_space<vmem>>, vector<1x4x8xbf16>
    %46 = vector.shape_cast %45 : vector<1x4x8xbf16> to vector<4x8xbf16>
    %cst_46 = arith.constant dense<0.000000e+00> : vector<81x8xf32>
    %47 = tpu.matmul %44, %46, %cst_46 {dimension_numbers = #tpu.dot_dimension_numbers<[1], [0], [0], [1], [0, 0, 1, 1], [], []>} : vector<81x4xbf16>, vector<4x8xbf16>, vector<81x8xf32> -> vector<81x8xf32>
    %48 = arith.addf %42, %47 : vector<81x8xf32>
    %c0_47 = arith.constant 0 : index
    %c10 = arith.constant 10 : index
    %c0_48 = arith.constant 0 : index
    %49 = vector.load %arg1[%c0_47, %c10, %c0_48] : memref<4x91x4xbf16, #tpu.memory_space<vmem>>, vector<1x81x4xbf16>
    %50 = vector.shape_cast %49 : vector<1x81x4xbf16> to vector<81x4xbf16>
    %c8 = arith.constant 8 : index
    %c0_49 = arith.constant 0 : index
    %c0_50 = arith.constant 0 : index
    %51 = vector.load %arg2[%c8, %c0_49, %c0_50] : memref<9x4x8xbf16, #tpu.memory_space<vmem>>, vector<1x4x8xbf16>
    %52 = vector.shape_cast %51 : vector<1x4x8xbf16> to vector<4x8xbf16>
    %cst_51 = arith.constant dense<0.000000e+00> : vector<81x8xf32>
    %53 = tpu.matmul %50, %52, %cst_51 {dimension_numbers = #tpu.dot_dimension_numbers<[1], [0], [0], [1], [0, 0, 1, 1], [], []>} : vector<81x4xbf16>, vector<4x8xbf16>, vector<81x8xf32> -> vector<81x8xf32>
    %54 = arith.addf %48, %53 : vector<81x8xf32>
    %c0_52 = arith.constant 0 : index
    %c0_53 = arith.constant 0 : index
    %55 = vector.load %arg3[%c0_52, %c0_53] : memref<1x8xf32, #tpu.memory_space<vmem>>, vector<1x8xf32>
    %56 = vector.broadcast %55 : vector<1x8xf32> to vector<81x8xf32>
    %57 = arith.addf %54, %56 : vector<81x8xf32>
    %cst_54 = arith.constant 0.000000e+00 : f32
    %58 = vector.broadcast %cst_54 : f32 to vector<81x8xf32>
    %59 = arith.maximumf %57, %58 : vector<81x8xf32>
    %60 = arith.truncf %59 : vector<81x8xf32> to vector<81x8xbf16>
    %c0_55 = arith.constant 0 : index
    %c0_56 = arith.constant 0 : index
    %c0_57 = arith.constant 0 : index
    %61 = vector.load %arg4[%c0_55, %c0_56, %c0_57] : memref<1x81x8xbf16, #tpu.memory_space<vmem>>, vector<1x81x8xbf16>
    %62 = vector.shape_cast %61 : vector<1x81x8xbf16> to vector<81x8xbf16>
    %63 = vector.shape_cast %60 : vector<81x8xbf16> to vector<1x81x8xbf16>
    tpu.vector_store %arg4[%c0_55, %c0_56, %c0_57], %63 {strides = array<i32>} : memref<1x81x8xbf16, #tpu.memory_space<vmem>>, vector<1x81x8xbf16>,
    return
  }
  func.func @transform_0(%arg0: i32) -> (i32, i32, i32) {
    %c0_i32 = arith.constant 0 : i32
    %c0_i32_0 = arith.constant 0 : i32
    %c0_i32_1 = arith.constant 0 : i32
    return %arg0, %c0_i32, %c0_i32_0 : i32, i32, i32
  }
  func.func @transform_1(%arg0: i32) -> (i32, i32, i32) {
    %c0_i32 = arith.constant 0 : i32
    %c0_i32_0 = arith.constant 0 : i32
    %c0_i32_1 = arith.constant 0 : i32
    %c0_i32_2 = arith.constant 0 : i32
    return %c0_i32, %c0_i32_0, %c0_i32_1 : i32, i32, i32
  }
  func.func @transform_2(%arg0: i32) -> (i32, i32) {
    %c0_i32 = arith.constant 0 : i32
    %c0_i32_0 = arith.constant 0 : i32
    %c0_i32_1 = arith.constant 0 : i32
    return %c0_i32, %c0_i32_0 : i32, i32
  }
  func.func @transform_3(%arg0: i32) -> (i32, i32, i32) {
    %c0_i32 = arith.constant 0 : i32
    %c0_i32_0 = arith.constant 0 : i32
    %c0_i32_1 = arith.constant 0 : i32
    return %arg0, %c0_i32, %c0_i32_0 : i32, i32, i32
  }
}

</mosaic_0001>

<llo_original>
// kernel: tpu_custom_call.1
$region0: #{tpu_custom_call.1}
  #allocation0 [shape = 'u32[]', space=smem, size = 0x4, offset = 0x4, fixed_abs, tag = 'smem constant byte address 0x4 - core index']
  #allocation1 [shape = 'u32[72,128]{1,0:T(1,128)}', space=vmem, size = 0x9000, scoped, tag = 'internal scratch']
  %s0 = inlined_call_operand.vmem [shape: bf16[8,91,4], index: 0, kind: input, shape index: {}]
  %s1 = inlined_call_operand.vmem [shape: bf16[9,4,8], index: 1, kind: input, shape index: {}]
  %s2 = inlined_call_operand.vmem [shape: f32[1,8], index: 2, kind: input, shape index: {}]
  %s3 = inlined_call_operand.vmem [shape: bf16[2,81,8], index: 3, kind: output, shape index: {}]
  %s4 = sld [smem:[#allocation0]]
  $region45: #{tpu_custom_call.1} parent=0
    _
  %s6 = ssub.s32 1, %s4
  %s7 = scalar_select 0, %s6, %s4
  loop: start=0, step=1, limit=4
  $region2: #{tpu_custom_call.1} parent=0 // loop_pre_header
    _
  $region3: #{tpu_custom_call.1} parent=0 // loop_header
    %s9 = sphi 0, %s13
    %p10 = scmp.ge.s32.totalorder %s9, 4
    %s19 = sphi 0, %s21
    %s22 = sphi 0, %s19
    %s23 = sphi 0, %s22
    %s39 = sphi 0, %s23
    %s43 = sphi 0, %s43
    %s45 = sphi 0, %s43
    %s46 = sphi 0, %s45
    %s60 = sphi 0, %s46
    %s64 = sphi 0, %s64
    %s66 = sphi 0, %s64
    %s67 = sphi 0, %s66
    %s81 = sphi 0, %s67
    %s87 = sphi 0, %s89
    %s90 = sphi 0, %s87
    %s91 = sphi 0, %s90
    %s107 = sphi 0, %s91
  $region4: #{tpu_custom_call.1} parent=0 // loop_header_branch
    %12 = sbr.rel (%p10) target = $region8
  $region5: #{tpu_custom_call.1} parent=0 // loop_body
    %s14 = ssub.s32 %s9, 1
    %s15 = ssub.s32 %s9, 2
    %s16 = sadd.s32 %s9, 1
    %s17 = ssub.s32 %s9, %s16
    %p18 = scmp.eq.s32.totalorder %s17, 0
    %s20 = sadd.s32 %s19, 1
    %s21 = scalar_select %p18, %s19, %s20
    %p24 = pneg %p18
    %p25 = scmp.eq.s32.totalorder %s9, 1
    %p26 = por %p24, %p25
    %p27 = scmp.ne.s32.totalorder %s19, %s22
    %p28 = scmp.eq.s32.totalorder %s9, 0
    %p29 = por %p27, %p28
    %p30 = scmp.ne.s32.totalorder %s19, %s22
    %p31 = scmp.eq.s32.totalorder %s14, 1
    %p32 = por %p30, %p31
    %p33 = scmp.ne.s32.totalorder %s22, %s23
    %p34 = scmp.eq.s32.totalorder %s14, 0
    %p35 = por %p33, %p34
    %p36 = scmp.ne.s32.totalorder %s22, %s23
    %p37 = scmp.eq.s32.totalorder %s15, 1
    %p38 = por %p36, %p37
    %p40 = scmp.ne.s32.totalorder %s23, %s39
    %p41 = scmp.eq.s32.totalorder %s15, 0
    %p42 = por %p40, %p41
    %s44 = sadd.s32 %s43, 1
    %p47 = scmp.eq.s32.totalorder %s9, 1
    %p48 = scmp.ne.s32.totalorder %s43, %s45
    %p49 = scmp.eq.s32.totalorder %s9, 0
    %p50 = por %p48, %p49
    %p51 = scmp.ne.s32.totalorder %s43, %s45
    %p52 = scmp.eq.s32.totalorder %s14, 1
    %p53 = por %p51, %p52
    %p54 = scmp.ne.s32.totalorder %s45, %s46
    %p55 = scmp.eq.s32.totalorder %s14, 0
    %p56 = por %p54, %p55
    %p57 = scmp.ne.s32.totalorder %s45, %s46
    %p58 = scmp.eq.s32.totalorder %s15, 1
    %p59 = por %p57, %p58
    %p61 = scmp.ne.s32.totalorder %s46, %s60
    %p62 = scmp.eq.s32.totalorder %s15, 0
    %p63 = por %p61, %p62
    %s65 = sadd.s32 %s64, 1
    %p68 = scmp.eq.s32.totalorder %s9, 1
    %p69 = scmp.ne.s32.totalorder %s64, %s66
    %p70 = scmp.eq.s32.totalorder %s9, 0
    %p71 = por %p69, %p70
    %p72 = scmp.ne.s32.totalorder %s64, %s66
    %p73 = scmp.eq.s32.totalorder %s14, 1
    %p74 = por %p72, %p73
    %p75 = scmp.ne.s32.totalorder %s66, %s67
    %p76 = scmp.eq.s32.totalorder %s14, 0
    %p77 = por %p75, %p76
    %p78 = scmp.ne.s32.totalorder %s66, %s67
    %p79 = scmp.eq.s32.totalorder %s15, 1
    %p80 = por %p78, %p79
    %p82 = scmp.ne.s32.totalorder %s67, %s81
    %p83 = scmp.eq.s32.totalorder %s15, 0
    %p84 = por %p82, %p83
    %s85 = ssub.s32 %s9, %s16
    %p86 = scmp.eq.s32.totalorder %s85, 0
    %s88 = sadd.s32 %s87, 1
    %s89 = scalar_select %p86, %s87, %s88
    %p92 = pneg %p86
    %p93 = scmp.eq.s32.totalorder %s9, 1
    %p94 = por %p92, %p93
    %p95 = scmp.ne.s32.totalorder %s87, %s90
    %p96 = scmp.eq.s32.totalorder %s9, 0
    %p97 = por %p95, %p96
    %p98 = scmp.ne.s32.totalorder %s87, %s90
    %p99 = scmp.eq.s32.totalorder %s14, 1
    %p100 = por %p98, %p99
    %p101 = scmp.ne.s32.totalorder %s90, %s91
    %p102 = scmp.eq.s32.totalorder %s14, 0
    %p103 = por %p101, %p102
    %p104 = scmp.ne.s32.totalorder %s90, %s91
    %p105 = scmp.eq.s32.totalorder %s15, 1
    %p106 = por %p104, %p105
    %p108 = scmp.ne.s32.totalorder %s91, %s107
    %p109 = scmp.eq.s32.totalorder %s15, 0
    %p110 = por %p108, %p109
    %p111 = scmp.le.s32.totalorder 1, %s9
    %p112 = scmp.lt.s32.totalorder %s9, 3
    %p113 = pnand %p111, %p112
    %p114 = pneg %p113
    // Predicated region
    $region9: #{tpu_custom_call.1} parent=5 // pred_check
      _
    $region10: #{tpu_custom_call.1} parent=5 // pred_check_branch
      %116 = sbr.rel (%p113) target = $region12
    $region11: #{tpu_custom_call.1} parent=5 // pred_region
      %s117 = ssub.s32 %s9, 1
      // Predicated region
      $region13: #{tpu_custom_call.1} parent=11 // pred_check
        %p118 = pneg %p56
      $region14: #{tpu_custom_call.1} parent=11 // pred_check_branch
        %120 = sbr.rel (%p118) target = $region16
      $region15: #{tpu_custom_call.1} parent=11 // pred_region
        _
      $region16: #{tpu_custom_call.1} parent=11 // pred_fallthru
        _
      // Predicated region
      $region17: #{tpu_custom_call.1} parent=11 // pred_check
        %p121 = pneg %p77
      $region18: #{tpu_custom_call.1} parent=11 // pred_check_branch
        %123 = sbr.rel (%p121) target = $region20
      $region19: #{tpu_custom_call.1} parent=11 // pred_region
        _
      $region20: #{tpu_custom_call.1} parent=11 // pred_fallthru
        _
    $region12: #{tpu_custom_call.1} parent=5 // pred_fallthru
      _
    %p124 = scmp.lt.s32.totalorder %s9, 2
    // Predicated region
    $region21: #{tpu_custom_call.1} parent=5 // pred_check
      %p125 = pneg %p124
    $region22: #{tpu_custom_call.1} parent=5 // pred_check_branch
      %127 = sbr.rel (%p125) target = $region24
    $region23: #{tpu_custom_call.1} parent=5 // pred_region
      // Predicated region
      $region25: #{tpu_custom_call.1} parent=23 // pred_check
        %p128 = pneg %p29
      $region26: #{tpu_custom_call.1} parent=23 // pred_check_branch
        %130 = sbr.rel (%p128) target = $region28
      $region27: #{tpu_custom_call.1} parent=23 // pred_region
        %s131 = smul.u32 4, %s9
        %p132 = scmp.lt.s32.totalorder %s131, 7
        %s133 = scalar_select %p132, %s131, 7
        %s134 = smul.addr %s133, 12
        %s135 = smul.addr %s134, 4
        %s136 = scalar_lea.vmem %s0, %s135
        %s137 = smul.u32 4, %s9
      $region28: #{tpu_custom_call.1} parent=23 // pred_fallthru
        _
    $region24: #{tpu_custom_call.1} parent=5 // pred_fallthru
      _
    %p138 = scmp.le.s32.totalorder 1, %s9
    %p139 = scmp.lt.s32.totalorder %s9, 3
    %p140 = pnand %p138, %p139
    %p141 = pneg %p140
    // Predicated region
    $region29: #{tpu_custom_call.1} parent=5 // pred_check
      _
    $region30: #{tpu_custom_call.1} parent=5 // pred_check_branch
      %143 = sbr.rel (%p140) target = $region32
    $region31: #{tpu_custom_call.1} parent=5 // pred_region
      %s144 = ssub.s32 %s9, 1
      %s145 = smul.u32 4, %s14
      %p146 = scmp.lt.s32.totalorder %s145, 7
      %s147 = scalar_select %p146, %s145, 7
      %s148 = smul.addr %s147, 12
      %s149 = smul.addr %s148, 4
      %s150 = scalar_lea.vmem %s0, %s149
      %p151 = pneg %p35
      %p152 = pneg %p32
      %p153 = pneg %p56
      %p154 = pneg %p53
      %p155 = pneg %p77
      %p156 = pneg %p74
      %p157 = pneg %p103
      %p158 = pneg %p100
      %p159 = scmp.lt.s32.totalorder %s14, 1
      %s160 = scalar_select %p159, %s14, 1
      %s161 = smul.addr %s160, 11
      %s162 = smul.addr %s161, 4
      %s163 = scalar_lea.vmem %s3, %s162
      %s164 = smul.u32 4, %s14
      %p165 = scmp.lt.s32.totalorder %s164, 7
      %s166 = scalar_select %p165, %s164, 7
      %s167 = smul.addr %s166, 12
      %s168 = smul.addr %s167, 4
      %s169 = scalar_lea.vmem %s0, %s168
      %s170 = smul.u32 4, %s14
      %p171 = scmp.lt.s32.totalorder %s14, 1
      %s172 = scalar_select %p171, %s14, 1
      %s173 = smul.addr %s172, 11
      %s174 = smul.addr %s173, 4
      %s175 = scalar_lea.vmem %s3, %s174
      %v177 = vld [vmem:[%s169] sm:$0xf]
      %v178 = vld [vmem:[%s169 + $0x4] sm:$0xf]
      %v179 = vld [vmem:[%s169 + $0x8] sm:$0xf]
      %v180 = vld [vmem:[%s169 + $0xc] sm:$0xf]
      %v181 = vld [vmem:[%s169 + $0x10] sm:$0xf]
      %v182 = vld [vmem:[%s169 + $0x14] sm:$0xf]
      %v183 = vld [vmem:[%s169 + $0x18] sm:$0xf]
      %v184 = vld [vmem:[%s169 + $0x1c] sm:$0xf]
      %v185 = vld [vmem:[%s169 + $0x20] sm:$0xf]
      %v186 = vld [vmem:[%s169 + $0x24] sm:$0xf]
      %v187 = vld [vmem:[%s169 + $0x28] sm:$0x1]
      %v188 = vld [vmem:[%s1] sm:$0x3]
      %s189 = scalar_lea.vmem %s169, 48
      %v190 = vld [vmem:[%s189] sm:$0xf]
      %v191 = vld [vmem:[%s189 + $0x4] sm:$0xf]
      %v192 = vld [vmem:[%s189 + $0x8] sm:$0xf]
      %v193 = vld [vmem:[%s189 + $0xc] sm:$0xf]
      %v194 = vld [vmem:[%s189 + $0x10] sm:$0xf]
      %v195 = vld [vmem:[%s189 + $0x14] sm:$0xf]
      %v196 = vld [vmem:[%s189 + $0x18] sm:$0xf]
      %v197 = vld [vmem:[%s189 + $0x1c] sm:$0xf]
      %v198 = vld [vmem:[%s189 + $0x20] sm:$0xf]
      %v199 = vld [vmem:[%s189 + $0x24] sm:$0xf]
      %v200 = vld [vmem:[%s189 + $0x28] sm:$0x1]
      %s201 = scalar_lea.vmem %s1, 2
      %v202 = vld [vmem:[%s201] sm:$0x3]
      %v214 = vunpack.c.l.b16 %v190
      %v215 = vunpack.c.l.b16 %v191
      %v216 = vunpack.c.l.b16 %v192
      %v217 = vunpack.c.l.b16 %v193
      %v218 = vunpack.c.l.b16 %v194
      %v219 = vunpack.c.l.b16 %v195
      %v220 = vunpack.c.l.b16 %v196
      %v221 = vunpack.c.l.b16 %v197
      %v222 = vunpack.c.l.b16 %v198
      %v223 = vunpack.c.l.b16 %v199
      %v224 = vunpack.c.l.b16 %v200
      %v225 = vpack.c.b16 %v215, %v214
      %v226 = vpack.c.b16 %v217, %v216
      %v227 = vpack.c.b16 %v219, %v218
      %v228 = vpack.c.b16 %v221, %v220
      %v229 = vpack.c.b16 %v223, %v222
      %v230 = vpack.c.b16 %v224, %v224
      %vm231 = vcmask 31744
      %v233 = vsel %vm231, %v225, 0
      %v236 = vsel %vm231, %v226, 0
      %v239 = vsel %vm231, %v227, 0
      %v242 = vsel %vm231, %v228, 0
      %v245 = vsel %vm231, %v229, 0
      %v248 = vsel %vm231, %v230, 0
      %vm250 = vcmask 1041408
      %v252 = vsel %vm250, %v202, 0
      %254 = vmatpush.bf16.msra.mxu0 0
      %255 = vmatpush.bf16.msra.mxu0 0
      %256 = vmatpush.bf16.msra.mxu0 0
      %257 = vmatpush.bf16.msra.mxu0 0
      %258 = vmatpush.bf16.msra.mxu0 0
      %259 = vmatpush.bf16.msra.mxu0 0
      %260 = vmatpush.bf16.msra.mxu0 0
      %261 = vmatpush.bf16.msra.mxu0 %v252
      %262 = vmatmul.bf16.gmra.mxu0 %v233
      %v263 = vpop.f32.mrf.mxu0
      %v264 = vadd.f32 0.0, %v263
      %v265 = vpop.f32.mrf.mxu0
      %v266 = vadd.f32 0.0, %v265
      %267 = vmatmul.bf16.gmra.mxu0 %v236
      %v268 = vpop.f32.mrf.mxu0
      %v269 = vadd.f32 0.0, %v268
      %v270 = vpop.f32.mrf.mxu0
      %v271 = vadd.f32 0.0, %v270
      %272 = vmatmul.bf16.gmra.mxu0 %v239
      %v273 = vpop.f32.mrf.mxu0
      %v274 = vadd.f32 0.0, %v273
      %v275 = vpop.f32.mrf.mxu0
      %v276 = vadd.f32 0.0, %v275
      %277 = vmatmul.bf16.gmra.mxu0 %v242
      %v278 = vpop.f32.mrf.mxu0
      %v279 = vadd.f32 0.0, %v278
      %v280 = vpop.f32.mrf.mxu0
      %v281 = vadd.f32 0.0, %v280
      %282 = vmatmul.bf16.gmra.mxu0 %v245
      %v283 = vpop.f32.mrf.mxu0
      %v284 = vadd.f32 0.0, %v283
      %v285 = vpop.f32.mrf.mxu0
      %v286 = vadd.f32 0.0, %v285
      %287 = vmatmul.bf16.gmra.mxu0 %v248
      %v288 = vpop.f32.mrf.mxu0
      %v289 = vadd.f32 0.0, %v288
      %v290 = vpop.f32.mrf.mxu0
      %291 = vdwg.mxu0
      %v303 = vunpack.c.l.b16 %v177
      %v304 = vunpack.c.l.b16 %v178
      %v305 = vunpack.c.l.b16 %v179
      %v306 = vunpack.c.l.b16 %v180
      %v307 = vunpack.c.l.b16 %v181
      %v308 = vunpack.c.l.b16 %v182
      %v309 = vunpack.c.l.b16 %v183
      %v310 = vunpack.c.l.b16 %v184
      %v311 = vunpack.c.l.b16 %v185
      %v312 = vunpack.c.l.b16 %v186
      %v313 = vunpack.c.l.b16 %v187
      %v314 = vpack.c.b16 %v304, %v303
      %v315 = vpack.c.b16 %v306, %v305
      %v316 = vpack.c.b16 %v308, %v307
      %v317 = vpack.c.b16 %v310, %v309
      %v318 = vpack.c.b16 %v312, %v311
      %v319 = vpack.c.b16 %v313, %v313
      %v321 = vsel %vm231, %v314, 0
      %v324 = vsel %vm231, %v315, 0
      %v327 = vsel %vm231, %v316, 0
      %v330 = vsel %vm231, %v317, 0
      %v333 = vsel %vm231, %v318, 0
      %v336 = vsel %vm231, %v319, 0
      %v339 = vsel %vm250, %v188, 0
      %341 = vmatpush.bf16.msra.mxu0 0
      %342 = vmatpush.bf16.msra.mxu0 0
      %343 = vmatpush.bf16.msra.mxu0 0
      %344 = vmatpush.bf16.msra.mxu0 0
      %345 = vmatpush.bf16.msra.mxu0 0
      %346 = vmatpush.bf16.msra.mxu0 0
      %347 = vmatpush.bf16.msra.mxu0 0
      %348 = vmatpush.bf16.msra.mxu0 %v339
      %349 = vmatmul.bf16.gmra.mxu0 %v321
      %v350 = vpop.f32.mrf.mxu0
      %v351 = vadd.f32 %v264, %v350
      %v352 = vpop.f32.mrf.mxu0
      %v353 = vadd.f32 %v266, %v352
      %354 = vmatmul.bf16.gmra.mxu0 %v324
      %v355 = vpop.f32.mrf.mxu0
      %v356 = vadd.f32 %v269, %v355
      %v357 = vpop.f32.mrf.mxu0
      %v358 = vadd.f32 %v271, %v357
      %359 = vmatmul.bf16.gmra.mxu0 %v327
      %v360 = vpop.f32.mrf.mxu0
      %v361 = vadd.f32 %v274, %v360
      %v362 = vpop.f32.mrf.mxu0
      %v363 = vadd.f32 %v276, %v362
      %364 = vmatmul.bf16.gmra.mxu0 %v330
      %v365 = vpop.f32.mrf.mxu0
      %v366 = vadd.f32 %v279, %v365
      %v367 = vpop.f32.mrf.mxu0
      %v368 = vadd.f32 %v281, %v367
      %369 = vmatmul.bf16.gmra.mxu0 %v333
      %v370 = vpop.f32.mrf.mxu0
      %v371 = vadd.f32 %v284, %v370
      %v372 = vpop.f32.mrf.mxu0
      %v373 = vadd.f32 %v286, %v372
      %374 = vmatmul.bf16.gmra.mxu0 %v336
      %v375 = vpop.f32.mrf.mxu0
      %v376 = vadd.f32 %v289, %v375
      %v377 = vpop.f32.mrf.mxu0
      %378 = vdwg.mxu0
      %s379 = scalar_lea.vmem %s1, 4
      %v380 = vld [vmem:[%s379] sm:$0x3]
      %vm381 = vsmask.f32 7424
      %v382 = vshrl.u32 %v314, 16
      %v384 = vshll.u32 %v314, 16
      %v386 = vrot.slane %v384, 1
      %v387 = vor.u32 %v382, %v386
      %v388 = vshll.u32 %v315, 16
      %v390 = vrot.slane %v388, 1
      %v391 = vsel %vm381, %v387, %v390
      %v392 = vshrl.u32 %v315, 16
      %v394 = vor.u32 %v392, %v390
      %v395 = vshll.u32 %v316, 16
      %v397 = vrot.slane %v395, 1
      %v398 = vsel %vm381, %v394, %v397
      %v399 = vshrl.u32 %v316, 16
      %v401 = vor.u32 %v399, %v397
      %v402 = vshll.u32 %v317, 16
      %v404 = vrot.slane %v402, 1
      %v405 = vsel %vm381, %v401, %v404
      %v406 = vshrl.u32 %v317, 16
      %v408 = vor.u32 %v406, %v404
      %v409 = vshll.u32 %v318, 16
      %v411 = vrot.slane %v409, 1
      %v412 = vsel %vm381, %v408, %v411
      %v413 = vshrl.u32 %v318, 16
      %v415 = vor.u32 %v413, %v411
      %v416 = vshll.u32 %v319, 16
      %v418 = vrot.slane %v416, 1
      %v419 = vsel %vm381, %v415, %v418
      %v420 = vshrl.u32 %v319, 16
      %v423 = vsel %vm231, %v391, 0
      %v426 = vsel %vm231, %v398, 0
      %v429 = vsel %vm231, %v405, 0
      %v432 = vsel %vm231, %v412, 0
      %v435 = vsel %vm231, %v419, 0
      %v438 = vsel %vm231, %v420, 0
      %v441 = vsel %vm250, %v380, 0
      %443 = vmatpush.bf16.msra.mxu0 0
      %444 = vmatpush.bf16.msra.mxu0 0
      %445 = vmatpush.bf16.msra.mxu0 0
      %446 = vmatpush.bf16.msra.mxu0 0
      %447 = vmatpush.bf16.msra.mxu0 0
      %448 = vmatpush.bf16.msra.mxu0 0
      %449 = vmatpush.bf16.msra.mxu0 0
      %450 = vmatpush.bf16.msra.mxu0 %v441
      %451 = vmatmul.bf16.gmra.mxu0 %v423
      %v452 = vpop.f32.mrf.mxu0
      %v453 = vadd.f32 0.0, %v452
      %v454 = vpop.f32.mrf.mxu0
      %v455 = vadd.f32 0.0, %v454
      %456 = vmatmul.bf16.gmra.mxu0 %v426
      %v457 = vpop.f32.mrf.mxu0
      %v458 = vadd.f32 0.0, %v457
      %v459 = vpop.f32.mrf.mxu0
      %v460 = vadd.f32 0.0, %v459
      %461 = vmatmul.bf16.gmra.mxu0 %v429
      %v462 = vpop.f32.mrf.mxu0
      %v463 = vadd.f32 0.0, %v462
      %v464 = vpop.f32.mrf.mxu0
      %v465 = vadd.f32 0.0, %v464
      %466 = vmatmul.bf16.gmra.mxu0 %v432
      %v467 = vpop.f32.mrf.mxu0
      %v468 = vadd.f32 0.0, %v467
      %v469 = vpop.f32.mrf.mxu0
      %v470 = vadd.f32 0.0, %v469
      %471 = vmatmul.bf16.gmra.mxu0 %v435
      %v472 = vpop.f32.mrf.mxu0
      %v473 = vadd.f32 0.0, %v472
      %v474 = vpop.f32.mrf.mxu0
      %v475 = vadd.f32 0.0, %v474
      %476 = vmatmul.bf16.gmra.mxu0 %v438
      %v477 = vpop.f32.mrf.mxu0
      %v478 = vadd.f32 0.0, %v477
      %v479 = vpop.f32.mrf.mxu0
      %480 = vdwg.mxu0
      %v481 = vadd.f32 %v351, %v453
      %v482 = vadd.f32 %v353, %v455
      %v483 = vadd.f32 %v356, %v458
      %v484 = vadd.f32 %v358, %v460
      %v485 = vadd.f32 %v361, %v463
      %v486 = vadd.f32 %v363, %v465
      %v487 = vadd.f32 %v366, %v468
      %v488 = vadd.f32 %v368, %v470
      %v489 = vadd.f32 %v371, %v473
      %v490 = vadd.f32 %v373, %v475
      %v491 = vadd.f32 %v376, %v478
      %s492 = scalar_lea.vmem %s169, 96
      %v493 = vld [vmem:[%s492] sm:$0xf]
      %v494 = vld [vmem:[%s492 + $0x4] sm:$0xf]
      %v495 = vld [vmem:[%s492 + $0x8] sm:$0xf]
      %v496 = vld [vmem:[%s492 + $0xc] sm:$0xf]
      %v497 = vld [vmem:[%s492 + $0x10] sm:$0xf]
      %v498 = vld [vmem:[%s492 + $0x14] sm:$0xf]
      %v499 = vld [vmem:[%s492 + $0x18] sm:$0xf]
      %v500 = vld [vmem:[%s492 + $0x1c] sm:$0xf]
      %v501 = vld [vmem:[%s492 + $0x20] sm:$0xf]
      %v502 = vld [vmem:[%s492 + $0x24] sm:$0xf]
      %v503 = vld [vmem:[%s492 + $0x28] sm:$0x1]
      %s504 = scalar_lea.vmem %s1, 6
      %v505 = vld [vmem:[%s504] sm:$0x3]
      %v517 = vunpack.c.l.b16 %v493
      %v518 = vunpack.c.l.b16 %v494
      %v519 = vunpack.c.l.b16 %v495
      %v520 = vunpack.c.l.b16 %v496
      %v521 = vunpack.c.l.b16 %v497
      %v522 = vunpack.c.l.b16 %v498
      %v523 = vunpack.c.l.b16 %v499
      %v524 = vunpack.c.l.b16 %v500
      %v525 = vunpack.c.l.b16 %v501
      %v526 = vunpack.c.l.b16 %v502
      %v527 = vunpack.c.l.b16 %v503
      %v528 = vpack.c.b16 %v518, %v517
      %v529 = vpack.c.b16 %v520, %v519
      %v530 = vpack.c.b16 %v522, %v521
      %v531 = vpack.c.b16 %v524, %v523
      %v532 = vpack.c.b16 %v526, %v525
      %v533 = vpack.c.b16 %v527, %v527
      %v535 = vsel %vm231, %v528, 0
      %v538 = vsel %vm231, %v529, 0
      %v541 = vsel %vm231, %v530, 0
      %v544 = vsel %vm231, %v531, 0
      %v547 = vsel %vm231, %v532, 0
      %v550 = vsel %vm231, %v533, 0
      %v553 = vsel %vm250, %v505, 0
      %555 = vmatpush.bf16.msra.mxu0 0
      %556 = vmatpush.bf16.msra.mxu0 0
      %557 = vmatpush.bf16.msra.mxu0 0
      %558 = vmatpush.bf16.msra.mxu0 0
      %559 = vmatpush.bf16.msra.mxu0 0
      %560 = vmatpush.bf16.msra.mxu0 0
      %561 = vmatpush.bf16.msra.mxu0 0
      %562 = vmatpush.bf16.msra.mxu0 %v553
      %563 = vmatmul.bf16.gmra.mxu0 %v535
      %v564 = vpop.f32.mrf.mxu0
      %v565 = vadd.f32 0.0, %v564
      %v566 = vpop.f32.mrf.mxu0
      %v567 = vadd.f32 0.0, %v566
      %568 = vmatmul.bf16.gmra.mxu0 %v538
      %v569 = vpop.f32.mrf.mxu0
      %v570 = vadd.f32 0.0, %v569
      %v571 = vpop.f32.mrf.mxu0
      %v572 = vadd.f32 0.0, %v571
      %573 = vmatmul.bf16.gmra.mxu0 %v541
      %v574 = vpop.f32.mrf.mxu0
      %v575 = vadd.f32 0.0, %v574
      %v576 = vpop.f32.mrf.mxu0
      %v577 = vadd.f32 0.0, %v576
      %578 = vmatmul.bf16.gmra.mxu0 %v544
      %v579 = vpop.f32.mrf.mxu0
      %v580 = vadd.f32 0.0, %v579
      %v581 = vpop.f32.mrf.mxu0
      %v582 = vadd.f32 0.0, %v581
      %583 = vmatmul.bf16.gmra.mxu0 %v547
      %v584 = vpop.f32.mrf.mxu0
      %v585 = vadd.f32 0.0, %v584
      %v586 = vpop.f32.mrf.mxu0
      %v587 = vadd.f32 0.0, %v586
      %588 = vmatmul.bf16.gmra.mxu0 %v550
      %v589 = vpop.f32.mrf.mxu0
      %v590 = vadd.f32 0.0, %v589
      %v591 = vpop.f32.mrf.mxu0
      %592 = vdwg.mxu0
      %v593 = vadd.f32 %v481, %v565
      %v594 = vadd.f32 %v482, %v567
      %v595 = vadd.f32 %v483, %v570
      %v596 = vadd.f32 %v484, %v572
      %v597 = vadd.f32 %v485, %v575
      %v598 = vadd.f32 %v486, %v577
      %v599 = vadd.f32 %v487, %v580
      %v600 = vadd.f32 %v488, %v582
      %v601 = vadd.f32 %v489, %v585
      %v602 = vadd.f32 %v490, %v587
      %v603 = vadd.f32 %v491, %v590
      %s604 = scalar_lea.vmem %s169, 144
      %v605 = vld [vmem:[%s604] sm:$0xf]
      %v606 = vld [vmem:[%s604 + $0x4] sm:$0xf]
      %v607 = vld [vmem:[%s604 + $0x8] sm:$0xf]
      %v608 = vld [vmem:[%s604 + $0xc] sm:$0xf]
      %v609 = vld [vmem:[%s604 + $0x10] sm:$0xf]
      %v610 = vld [vmem:[%s604 + $0x14] sm:$0xf]
      %v611 = vld [vmem:[%s604 + $0x18] sm:$0xf]
      %v612 = vld [vmem:[%s604 + $0x1c] sm:$0xf]
      %v613 = vld [vmem:[%s604 + $0x20] sm:$0xf]
      %v614 = vld [vmem:[%s604 + $0x24] sm:$0xf]
      %v615 = vld [vmem:[%s604 + $0x28] sm:$0x1]
      %s616 = scalar_lea.vmem %s1, 8
      %v617 = vld [vmem:[%s616] sm:$0x3]
      %v629 = vunpack.c.l.b16 %v605
      %v630 = vunpack.c.l.b16 %v606
      %v631 = vunpack.c.l.b16 %v607
      %v632 = vunpack.c.l.b16 %v608
      %v633 = vunpack.c.l.b16 %v609
      %v634 = vunpack.c.l.b16 %v610
      %v635 = vunpack.c.l.b16 %v611
      %v636 = vunpack.c.l.b16 %v612
      %v637 = vunpack.c.l.b16 %v613
      %v638 = vunpack.c.l.b16 %v614
      %v639 = vunpack.c.l.b16 %v615
      %v640 = vpack.c.b16 %v630, %v629
      %v641 = vpack.c.b16 %v632, %v631
      %v642 = vpack.c.b16 %v634, %v633
      %v643 = vpack.c.b16 %v636, %v635
      %v644 = vpack.c.b16 %v638, %v637
      %v645 = vpack.c.b16 %v639, %v639
      %v647 = vsel %vm231, %v640, 0
      %v650 = vsel %vm231, %v641, 0
      %v653 = vsel %vm231, %v642, 0
      %v656 = vsel %vm231, %v643, 0
      %v659 = vsel %vm231, %v644, 0
      %v662 = vsel %vm231, %v645, 0
      %v665 = vsel %vm250, %v617, 0
      %667 = vmatpush.bf16.msra.mxu0 0
      %668 = vmatpush.bf16.msra.mxu0 0
      %669 = vmatpush.bf16.msra.mxu0 0
      %670 = vmatpush.bf16.msra.mxu0 0
      %671 = vmatpush.bf16.msra.mxu0 0
      %672 = vmatpush.bf16.msra.mxu0 0
      %673 = vmatpush.bf16.msra.mxu0 0
      %674 = vmatpush.bf16.msra.mxu0 %v665
      %675 = vmatmul.bf16.gmra.mxu0 %v647
      %v676 = vpop.f32.mrf.mxu0
      %v677 = vadd.f32 0.0, %v676
      %v678 = vpop.f32.mrf.mxu0
      %v679 = vadd.f32 0.0, %v678
      %680 = vmatmul.bf16.gmra.mxu0 %v650
      %v681 = vpop.f32.mrf.mxu0
      %v682 = vadd.f32 0.0, %v681
      %v683 = vpop.f32.mrf.mxu0
      %v684 = vadd.f32 0.0, %v683
      %685 = vmatmul.bf16.gmra.mxu0 %v653
      %v686 = vpop.f32.mrf.mxu0
      %v687 = vadd.f32 0.0, %v686
      %v688 = vpop.f32.mrf.mxu0
      %v689 = vadd.f32 0.0, %v688
      %690 = vmatmul.bf16.gmra.mxu0 %v656
      %v691 = vpop.f32.mrf.mxu0
      %v692 = vadd.f32 0.0, %v691
      %v693 = vpop.f32.mrf.mxu0
      %v694 = vadd.f32 0.0, %v693
      %695 = vmatmul.bf16.gmra.mxu0 %v659
      %v696 = vpop.f32.mrf.mxu0
      %v697 = vadd.f32 0.0, %v696
      %v698 = vpop.f32.mrf.mxu0
      %v699 = vadd.f32 0.0, %v698
      %700 = vmatmul.bf16.gmra.mxu0 %v662
      %v701 = vpop.f32.mrf.mxu0
      %v702 = vadd.f32 0.0, %v701
      %v703 = vpop.f32.mrf.mxu0
      %704 = vdwg.mxu0
      %v705 = vadd.f32 %v593, %v677
      %v706 = vadd.f32 %v594, %v679
      %v707 = vadd.f32 %v595, %v682
      %v708 = vadd.f32 %v596, %v684
      %v709 = vadd.f32 %v597, %v687
      %v710 = vadd.f32 %v598, %v689
      %v711 = vadd.f32 %v599, %v692
      %v712 = vadd.f32 %v600, %v694
      %v713 = vadd.f32 %v601, %v697
      %v714 = vadd.f32 %v602, %v699
      %v715 = vadd.f32 %v603, %v702
      %s716 = scalar_lea.vmem %s1, 10
      %v717 = vld [vmem:[%s716] sm:$0x3]
      %v718 = vshrl.u32 %v528, 16
      %v720 = vshll.u32 %v528, 16
      %v722 = vrot.slane %v720, 1
      %v723 = vor.u32 %v718, %v722
      %v724 = vshll.u32 %v529, 16
      %v726 = vrot.slane %v724, 1
      %v727 = vsel %vm381, %v723, %v726
      %v728 = vshrl.u32 %v529, 16
      %v730 = vor.u32 %v728, %v726
      %v731 = vshll.u32 %v530, 16
      %v733 = vrot.slane %v731, 1
      %v734 = vsel %vm381, %v730, %v733
      %v735 = vshrl.u32 %v530, 16
      %v737 = vor.u32 %v735, %v733
      %v738 = vshll.u32 %v531, 16
      %v740 = vrot.slane %v738, 1
      %v741 = vsel %vm381, %v737, %v740
      %v742 = vshrl.u32 %v531, 16
      %v744 = vor.u32 %v742, %v740
      %v745 = vshll.u32 %v532, 16
      %v747 = vrot.slane %v745, 1
      %v748 = vsel %vm381, %v744, %v747
      %v749 = vshrl.u32 %v532, 16
      %v751 = vor.u32 %v749, %v747
      %v752 = vshll.u32 %v533, 16
      %v754 = vrot.slane %v752, 1
      %v755 = vsel %vm381, %v751, %v754
      %v756 = vshrl.u32 %v533, 16
      %v759 = vsel %vm231, %v727, 0
      %v762 = vsel %vm231, %v734, 0
      %v765 = vsel %vm231, %v741, 0
      %v768 = vsel %vm231, %v748, 0
      %v771 = vsel %vm231, %v755, 0
      %v774 = vsel %vm231, %v756, 0
      %v777 = vsel %vm250, %v717, 0
      %779 = vmatpush.bf16.msra.mxu0 0
      %780 = vmatpush.bf16.msra.mxu0 0
      %781 = vmatpush.bf16.msra.mxu0 0
      %782 = vmatpush.bf16.msra.mxu0 0
      %783 = vmatpush.bf16.msra.mxu0 0
      %784 = vmatpush.bf16.msra.mxu0 0
      %785 = vmatpush.bf16.msra.mxu0 0
      %786 = vmatpush.bf16.msra.mxu0 %v777
      %787 = vmatmul.bf16.gmra.mxu0 %v759
      %v788 = vpop.f32.mrf.mxu0
      %v789 = vadd.f32 0.0, %v788
      %v790 = vpop.f32.mrf.mxu0
      %v791 = vadd.f32 0.0, %v790
      %792 = vmatmul.bf16.gmra.mxu0 %v762
      %v793 = vpop.f32.mrf.mxu0
      %v794 = vadd.f32 0.0, %v793
      %v795 = vpop.f32.mrf.mxu0
      %v796 = vadd.f32 0.0, %v795
      %797 = vmatmul.bf16.gmra.mxu0 %v765
      %v798 = vpop.f32.mrf.mxu0
      %v799 = vadd.f32 0.0, %v798
      %v800 = vpop.f32.mrf.mxu0
      %v801 = vadd.f32 0.0, %v800
      %802 = vmatmul.bf16.gmra.mxu0 %v768
      %v803 = vpop.f32.mrf.mxu0
      %v804 = vadd.f32 0.0, %v803
      %v805 = vpop.f32.mrf.mxu0
      %v806 = vadd.f32 0.0, %v805
      %807 = vmatmul.bf16.gmra.mxu0 %v771
      %v808 = vpop.f32.mrf.mxu0
      %v809 = vadd.f32 0.0, %v808
      %v810 = vpop.f32.mrf.mxu0
      %v811 = vadd.f32 0.0, %v810
      %812 = vmatmul.bf16.gmra.mxu0 %v774
      %v813 = vpop.f32.mrf.mxu0
      %v814 = vadd.f32 0.0, %v813
      %v815 = vpop.f32.mrf.mxu0
      %816 = vdwg.mxu0
      %v817 = vadd.f32 %v705, %v789
      %v818 = vadd.f32 %v706, %v791
      %v819 = vadd.f32 %v707, %v794
      %v820 = vadd.f32 %v708, %v796
      %v821 = vadd.f32 %v709, %v799
      %v822 = vadd.f32 %v710, %v801
      %v823 = vadd.f32 %v711, %v804
      %v824 = vadd.f32 %v712, %v806
      %v825 = vadd.f32 %v713, %v809
      %v826 = vadd.f32 %v714, %v811
      %v827 = vadd.f32 %v715, %v814
      %v828 = vld [vmem:[%s169 + $0x4] sm:$0xf]
      %v829 = vld [vmem:[%s169 + $0x8] sm:$0xf]
      %v830 = vld [vmem:[%s169 + $0xc] sm:$0xf]
      %v831 = vld [vmem:[%s169 + $0x10] sm:$0xf]
      %v832 = vld [vmem:[%s169 + $0x14] sm:$0xf]
      %v833 = vld [vmem:[%s169 + $0x18] sm:$0xf]
      %v834 = vld [vmem:[%s169 + $0x1c] sm:$0xf]
      %v835 = vld [vmem:[%s169 + $0x20] sm:$0xf]
      %v836 = vld [vmem:[%s169 + $0x24] sm:$0xf]
      %v837 = vld [vmem:[%s169 + $0x28] sm:$0xf]
      %v838 = vld [vmem:[%s169 + $0x2c] sm:$0x1]
      %s839 = scalar_lea.vmem %s1, 12
      %v840 = vld [vmem:[%s839] sm:$0x3]
      %v852 = vunpack.c.l.b16 %v828
      %v853 = vunpack.c.l.b16 %v829
      %v854 = vunpack.c.l.b16 %v830
      %v855 = vunpack.c.l.b16 %v831
      %v856 = vunpack.c.l.b16 %v832
      %v857 = vunpack.c.l.b16 %v833
      %v858 = vunpack.c.l.b16 %v834
      %v859 = vunpack.c.l.b16 %v835
      %v860 = vunpack.c.l.b16 %v836
      %v861 = vunpack.c.l.b16 %v837
      %v862 = vunpack.c.l.b16 %v838
      %v863 = vpack.c.b16 %v853, %v852
      %v864 = vpack.c.b16 %v855, %v854
      %v865 = vpack.c.b16 %v857, %v856
      %v866 = vpack.c.b16 %v859, %v858
      %v867 = vpack.c.b16 %v861, %v860
      %v868 = vpack.c.b16 %v862, %v862
      %v870 = vshrl.u32 %v863, 16
      %v872 = vshll.u32 %v863, 16
      %v874 = vrot.slane %v872, 1
      %v875 = vor.u32 %v870, %v874
      %v877 = vshll.u32 %v864, 16
      %v879 = vrot.slane %v877, 1
      %v880 = vsel %vm381, %v875, %v879
      %v881 = vshrl.u32 %v864, 16
      %v883 = vor.u32 %v881, %v879
      %v885 = vshll.u32 %v865, 16
      %v887 = vrot.slane %v885, 1
      %v888 = vsel %vm381, %v883, %v887
      %v889 = vshrl.u32 %v865, 16
      %v891 = vor.u32 %v889, %v887
      %v893 = vshll.u32 %v866, 16
      %v895 = vrot.slane %v893, 1
      %v896 = vsel %vm381, %v891, %v895
      %v897 = vshrl.u32 %v866, 16
      %v899 = vor.u32 %v897, %v895
      %v901 = vshll.u32 %v867, 16
      %v903 = vrot.slane %v901, 1
      %v904 = vsel %vm381, %v899, %v903
      %v905 = vshrl.u32 %v867, 16
      %v907 = vor.u32 %v905, %v903
      %v909 = vshll.u32 %v868, 16
      %v911 = vrot.slane %v909, 1
      %v912 = vsel %vm381, %v907, %v911
      %v913 = vshrl.u32 %v868, 16
      %v916 = vsel %vm231, %v880, 0
      %v919 = vsel %vm231, %v888, 0
      %v922 = vsel %vm231, %v896, 0
      %v925 = vsel %vm231, %v904, 0
      %v928 = vsel %vm231, %v912, 0
      %v931 = vsel %vm231, %v913, 0
      %v934 = vsel %vm250, %v840, 0
      %936 = vmatpush.bf16.msra.mxu0 0
      %937 = vmatpush.bf16.msra.mxu0 0
      %938 = vmatpush.bf16.msra.mxu0 0
      %939 = vmatpush.bf16.msra.mxu0 0
      %940 = vmatpush.bf16.msra.mxu0 0
      %941 = vmatpush.bf16.msra.mxu0 0
      %942 = vmatpush.bf16.msra.mxu0 0
      %943 = vmatpush.bf16.msra.mxu0 %v934
      %944 = vmatmul.bf16.gmra.mxu0 %v916
      %v945 = vpop.f32.mrf.mxu0
      %v946 = vadd.f32 0.0, %v945
      %v947 = vpop.f32.mrf.mxu0
      %v948 = vadd.f32 0.0, %v947
      %949 = vmatmul.bf16.gmra.mxu0 %v919
      %v950 = vpop.f32.mrf.mxu0
      %v951 = vadd.f32 0.0, %v950
      %v952 = vpop.f32.mrf.mxu0
      %v953 = vadd.f32 0.0, %v952
      %954 = vmatmul.bf16.gmra.mxu0 %v922
      %v955 = vpop.f32.mrf.mxu0
      %v956 = vadd.f32 0.0, %v955
      %v957 = vpop.f32.mrf.mxu0
      %v958 = vadd.f32 0.0, %v957
      %959 = vmatmul.bf16.gmra.mxu0 %v925
      %v960 = vpop.f32.mrf.mxu0
      %v961 = vadd.f32 0.0, %v960
      %v962 = vpop.f32.mrf.mxu0
      %v963 = vadd.f32 0.0, %v962
      %964 = vmatmul.bf16.gmra.mxu0 %v928
      %v965 = vpop.f32.mrf.mxu0
      %v966 = vadd.f32 0.0, %v965
      %v967 = vpop.f32.mrf.mxu0
      %v968 = vadd.f32 0.0, %v967
      %969 = vmatmul.bf16.gmra.mxu0 %v931
      %v970 = vpop.f32.mrf.mxu0
      %v971 = vadd.f32 0.0, %v970
      %v972 = vpop.f32.mrf.mxu0
      %973 = vdwg.mxu0
      %v974 = vadd.f32 %v817, %v946
      %v975 = vadd.f32 %v818, %v948
      %v976 = vadd.f32 %v819, %v951
      %v977 = vadd.f32 %v820, %v953
      %v978 = vadd.f32 %v821, %v956
      %v979 = vadd.f32 %v822, %v958
      %v980 = vadd.f32 %v823, %v961
      %v981 = vadd.f32 %v824, %v963
      %v982 = vadd.f32 %v825, %v966
      %v983 = vadd.f32 %v826, %v968
      %v984 = vadd.f32 %v827, %v971
      %v985 = vld [vmem:[%s189 + $0x4] sm:$0xf]
      %v986 = vld [vmem:[%s189 + $0x8] sm:$0xf]
      %v987 = vld [vmem:[%s189 + $0xc] sm:$0xf]
      %v988 = vld [vmem:[%s189 + $0x10] sm:$0xf]
      %v989 = vld [vmem:[%s189 + $0x14] sm:$0xf]
      %v990 = vld [vmem:[%s189 + $0x18] sm:$0xf]
      %v991 = vld [vmem:[%s189 + $0x1c] sm:$0xf]
      %v992 = vld [vmem:[%s189 + $0x20] sm:$0xf]
      %v993 = vld [vmem:[%s189 + $0x24] sm:$0xf]
      %v994 = vld [vmem:[%s189 + $0x28] sm:$0xf]
      %v995 = vld [vmem:[%s189 + $0x2c] sm:$0x1]
      %s996 = scalar_lea.vmem %s1, 14
      %v997 = vld [vmem:[%s996] sm:$0x3]
      %v1009 = vunpack.c.l.b16 %v985
      %v1010 = vunpack.c.l.b16 %v986
      %v1011 = vunpack.c.l.b16 %v987
      %v1012 = vunpack.c.l.b16 %v988
      %v1013 = vunpack.c.l.b16 %v989
      %v1014 = vunpack.c.l.b16 %v990
      %v1015 = vunpack.c.l.b16 %v991
      %v1016 = vunpack.c.l.b16 %v992
      %v1017 = vunpack.c.l.b16 %v993
      %v1018 = vunpack.c.l.b16 %v994
      %v1019 = vunpack.c.l.b16 %v995
      %v1020 = vpack.c.b16 %v1010, %v1009
      %v1021 = vpack.c.b16 %v1012, %v1011
      %v1022 = vpack.c.b16 %v1014, %v1013
      %v1023 = vpack.c.b16 %v1016, %v1015
      %v1024 = vpack.c.b16 %v1018, %v1017
      %v1025 = vpack.c.b16 %v1019, %v1019
      %v1027 = vshrl.u32 %v1020, 16
      %v1029 = vshll.u32 %v1020, 16
      %v1031 = vrot.slane %v1029, 1
      %v1032 = vor.u32 %v1027, %v1031
      %v1034 = vshll.u32 %v1021, 16
      %v1036 = vrot.slane %v1034, 1
      %v1037 = vsel %vm381, %v1032, %v1036
      %v1038 = vshrl.u32 %v1021, 16
      %v1040 = vor.u32 %v1038, %v1036
      %v1042 = vshll.u32 %v1022, 16
      %v1044 = vrot.slane %v1042, 1
      %v1045 = vsel %vm381, %v1040, %v1044
      %v1046 = vshrl.u32 %v1022, 16
      %v1048 = vor.u32 %v1046, %v1044
      %v1050 = vshll.u32 %v1023, 16
      %v1052 = vrot.slane %v1050, 1
      %v1053 = vsel %vm381, %v1048, %v1052
      %v1054 = vshrl.u32 %v1023, 16
      %v1056 = vor.u32 %v1054, %v1052
      %v1058 = vshll.u32 %v1024, 16
      %v1060 = vrot.slane %v1058, 1
      %v1061 = vsel %vm381, %v1056, %v1060
      %v1062 = vshrl.u32 %v1024, 16
      %v1064 = vor.u32 %v1062, %v1060
      %v1066 = vshll.u32 %v1025, 16
      %v1068 = vrot.slane %v1066, 1
      %v1069 = vsel %vm381, %v1064, %v1068
      %v1070 = vshrl.u32 %v1025, 16
      %v1073 = vsel %vm231, %v1037, 0
      %v1076 = vsel %vm231, %v1045, 0
      %v1079 = vsel %vm231, %v1053, 0
      %v1082 = vsel %vm231, %v1061, 0
      %v1085 = vsel %vm231, %v1069, 0
      %v1088 = vsel %vm231, %v1070, 0
      %v1091 = vsel %vm250, %v997, 0
      %1093 = vmatpush.bf16.msra.mxu0 0
      %1094 = vmatpush.bf16.msra.mxu0 0
      %1095 = vmatpush.bf16.msra.mxu0 0
      %1096 = vmatpush.bf16.msra.mxu0 0
      %1097 = vmatpush.bf16.msra.mxu0 0
      %1098 = vmatpush.bf16.msra.mxu0 0
      %1099 = vmatpush.bf16.msra.mxu0 0
      %1100 = vmatpush.bf16.msra.mxu0 %v1091
      %1101 = vmatmul.bf16.gmra.mxu0 %v1073
      %v1102 = vpop.f32.mrf.mxu0
      %v1103 = vadd.f32 0.0, %v1102
      %v1104 = vpop.f32.mrf.mxu0
      %v1105 = vadd.f32 0.0, %v1104
      %1106 = vmatmul.bf16.gmra.mxu0 %v1076
      %v1107 = vpop.f32.mrf.mxu0
      %v1108 = vadd.f32 0.0, %v1107
      %v1109 = vpop.f32.mrf.mxu0
      %v1110 = vadd.f32 0.0, %v1109
      %1111 = vmatmul.bf16.gmra.mxu0 %v1079
      %v1112 = vpop.f32.mrf.mxu0
      %v1113 = vadd.f32 0.0, %v1112
      %v1114 = vpop.f32.mrf.mxu0
      %v1115 = vadd.f32 0.0, %v1114
      %1116 = vmatmul.bf16.gmra.mxu0 %v1082
      %v1117 = vpop.f32.mrf.mxu0
      %v1118 = vadd.f32 0.0, %v1117
      %v1119 = vpop.f32.mrf.mxu0
      %v1120 = vadd.f32 0.0, %v1119
      %1121 = vmatmul.bf16.gmra.mxu0 %v1085
      %v1122 = vpop.f32.mrf.mxu0
      %v1123 = vadd.f32 0.0, %v1122
      %v1124 = vpop.f32.mrf.mxu0
      %v1125 = vadd.f32 0.0, %v1124
      %1126 = vmatmul.bf16.gmra.mxu0 %v1088
      %v1127 = vpop.f32.mrf.mxu0
      %v1128 = vadd.f32 0.0, %v1127
      %v1129 = vpop.f32.mrf.mxu0
      %1130 = vdwg.mxu0
      %v1131 = vadd.f32 %v974, %v1103
      %v1132 = vadd.f32 %v975, %v1105
      %v1133 = vadd.f32 %v976, %v1108
      %v1134 = vadd.f32 %v977, %v1110
      %v1135 = vadd.f32 %v978, %v1113
      %v1136 = vadd.f32 %v979, %v1115
      %v1137 = vadd.f32 %v980, %v1118
      %v1138 = vadd.f32 %v981, %v1120
      %v1139 = vadd.f32 %v982, %v1123
      %v1140 = vadd.f32 %v983, %v1125
      %v1141 = vadd.f32 %v984, %v1128
      %v1142 = vld [vmem:[%s169 + $0x4] sm:$0xe]
      %v1143 = vld [vmem:[%s169 + $0x2c] sm:$0x3]
      %s1144 = scalar_lea.vmem %s1, 16
      %v1145 = vld [vmem:[%s1144] sm:$0x3]
      %v1148 = vunpack.c.l.b16 %v1142
      %v1149 = vunpack.c.l.b16 %v1143
      %v1150 = vpack.c.b16 %v853, %v1148
      %v1151 = vpack.c.b16 %v1149, %v1149
      %vm1152 = vcmask 1046528
      %v1153 = vrot.slane %v1150, 1
      %v1154 = vrot.slane %v864, 1
      %v1155 = vsel %vm1152, %v1153, %v1154
      %v1156 = vrot.slane %v865, 1
      %v1157 = vsel %vm1152, %v1154, %v1156
      %v1158 = vrot.slane %v866, 1
      %v1159 = vsel %vm1152, %v1156, %v1158
      %v1160 = vrot.slane %v867, 1
      %v1161 = vsel %vm1152, %v1158, %v1160
      %v1162 = vrot.slane %v1151, 1
      %v1163 = vsel %vm1152, %v1160, %v1162
      %v1165 = vsel %vm231, %v1155, 0
      %v1168 = vsel %vm231, %v1157, 0
      %v1171 = vsel %vm231, %v1159, 0
      %v1174 = vsel %vm231, %v1161, 0
      %v1177 = vsel %vm231, %v1163, 0
      %v1180 = vsel %vm231, %v1162, 0
      %v1183 = vsel %vm250, %v1145, 0
      %1185 = vmatpush.bf16.msra.mxu0 0
      %1186 = vmatpush.bf16.msra.mxu0 0
      %1187 = vmatpush.bf16.msra.mxu0 0
      %1188 = vmatpush.bf16.msra.mxu0 0
      %1189 = vmatpush.bf16.msra.mxu0 0
      %1190 = vmatpush.bf16.msra.mxu0 0
      %1191 = vmatpush.bf16.msra.mxu0 0
      %1192 = vmatpush.bf16.msra.mxu0 %v1183
      %1193 = vmatmul.bf16.gmra.mxu0 %v1165
      %v1194 = vpop.f32.mrf.mxu0
      %v1195 = vadd.f32 0.0, %v1194
      %v1196 = vpop.f32.mrf.mxu0
      %v1197 = vadd.f32 0.0, %v1196
      %1198 = vmatmul.bf16.gmra.mxu0 %v1168
      %v1199 = vpop.f32.mrf.mxu0
      %v1200 = vadd.f32 0.0, %v1199
      %v1201 = vpop.f32.mrf.mxu0
      %v1202 = vadd.f32 0.0, %v1201
      %1203 = vmatmul.bf16.gmra.mxu0 %v1171
      %v1204 = vpop.f32.mrf.mxu0
      %v1205 = vadd.f32 0.0, %v1204
      %v1206 = vpop.f32.mrf.mxu0
      %v1207 = vadd.f32 0.0, %v1206
      %1208 = vmatmul.bf16.gmra.mxu0 %v1174
      %v1209 = vpop.f32.mrf.mxu0
      %v1210 = vadd.f32 0.0, %v1209
      %v1211 = vpop.f32.mrf.mxu0
      %v1212 = vadd.f32 0.0, %v1211
      %1213 = vmatmul.bf16.gmra.mxu0 %v1177
      %v1214 = vpop.f32.mrf.mxu0
      %v1215 = vadd.f32 0.0, %v1214
      %v1216 = vpop.f32.mrf.mxu0
      %v1217 = vadd.f32 0.0, %v1216
      %1218 = vmatmul.bf16.gmra.mxu0 %v1180
      %v1219 = vpop.f32.mrf.mxu0
      %v1220 = vadd.f32 0.0, %v1219
      %v1221 = vpop.f32.mrf.mxu0
      %1222 = vdwg.mxu0
      %v1223 = vadd.f32 %v1131, %v1195
      %v1224 = vadd.f32 %v1132, %v1197
      %v1225 = vadd.f32 %v1133, %v1200
      %v1226 = vadd.f32 %v1134, %v1202
      %v1227 = vadd.f32 %v1135, %v1205
      %v1228 = vadd.f32 %v1136, %v1207
      %v1229 = vadd.f32 %v1137, %v1210
      %v1230 = vadd.f32 %v1138, %v1212
      %v1231 = vadd.f32 %v1139, %v1215
      %v1232 = vadd.f32 %v1140, %v1217
      %v1233 = vadd.f32 %v1141, %v1220
      %v1234 = vld [vmem:[%s2] sm:$0x1]
      %v1236 = vperm.slane %v1234, 0
      %v1238 = vadd.f32 %v1223, %v1236
      %v1239 = vadd.f32 %v1224, %v1236
      %v1240 = vadd.f32 %v1225, %v1236
      %v1241 = vadd.f32 %v1226, %v1236
      %v1242 = vadd.f32 %v1227, %v1236
      %v1243 = vadd.f32 %v1228, %v1236
      %v1244 = vadd.f32 %v1229, %v1236
      %v1245 = vadd.f32 %v1230, %v1236
      %v1246 = vadd.f32 %v1231, %v1236
      %v1247 = vadd.f32 %v1232, %v1236
      %v1248 = vadd.f32 %v1233, %v1236
      %v1249 = vmax.f32 %v1238, 0.0
      %v1250 = vmax.f32 %v1239, 0.0
      %v1251 = vmax.f32 %v1240, 0.0
      %v1252 = vmax.f32 %v1241, 0.0
      %v1253 = vmax.f32 %v1242, 0.0
      %v1254 = vmax.f32 %v1243, 0.0
      %v1255 = vmax.f32 %v1244, 0.0
      %v1256 = vmax.f32 %v1245, 0.0
      %v1257 = vmax.f32 %v1246, 0.0
      %v1258 = vmax.f32 %v1247, 0.0
      %v1259 = vmax.f32 %v1248, 0.0
      %v1260 = vpack.c.bf16 %v1249, %v1249
      %v1261 = vpack.c.bf16 %v1250, %v1250
      %v1262 = vpack.c.bf16 %v1251, %v1251
      %v1263 = vpack.c.bf16 %v1252, %v1252
      %v1264 = vpack.c.bf16 %v1253, %v1253
      %v1265 = vpack.c.bf16 %v1254, %v1254
      %v1266 = vpack.c.bf16 %v1255, %v1255
      %v1267 = vpack.c.bf16 %v1256, %v1256
      %v1268 = vpack.c.bf16 %v1257, %v1257
      %v1269 = vpack.c.bf16 %v1258, %v1258
      %v1270 = vpack.c.bf16 %v1259, %v1259
      %vm1271 = vcmask 60416
      %1272 = vst.msk [vmem:[%s175] sm:$0xf] %vm1271, %v1260
      %1273 = vst.msk [vmem:[%s175 + $0x4] sm:$0xf] %vm1271, %v1261
      %1274 = vst.msk [vmem:[%s175 + $0x8] sm:$0xf] %vm1271, %v1262
      %1275 = vst.msk [vmem:[%s175 + $0xc] sm:$0xf] %vm1271, %v1263
      %1276 = vst.msk [vmem:[%s175 + $0x10] sm:$0xf] %vm1271, %v1264
      %1277 = vst.msk [vmem:[%s175 + $0x14] sm:$0xf] %vm1271, %v1265
      %1278 = vst.msk [vmem:[%s175 + $0x18] sm:$0xf] %vm1271, %v1266
      %1279 = vst.msk [vmem:[%s175 + $0x1c] sm:$0xf] %vm1271, %v1267
      %1280 = vst.msk [vmem:[%s175 + $0x20] sm:$0xf] %vm1271, %v1268
      %1281 = vst.msk [vmem:[%s175 + $0x24] sm:$0xf] %vm1271, %v1269
      %vm1282 = vcmask 57344
      %vm1283 = vsmask.f32 256
      %vm1284 = vmand %vm1282, %vm1283
      %v1285 = vld [vmem:[%s175 + $0x28] sm:$0x1]
      %v1286 = vsel %vm1284, %v1270, %v1285
      %1287 = vst [vmem:[%s175 + $0x28] sm:$0x1] %v1286
      %p1288 = scmp.lt.s32.totalorder %s14, 1
      %s1289 = scalar_select %p1288, %s14, 1
      %s1290 = smul.addr %s1289, 11
      %s1291 = smul.addr %s1290, 4
      %s1292 = scalar_lea.vmem %s3, %s1291
      // Predicated region
      $region33: #{tpu_custom_call.1} parent=31 // pred_check
        %p1293 = pneg %p100
      $region34: #{tpu_custom_call.1} parent=31 // pred_check_branch
        %1295 = sbr.rel (%p1293) target = $region36
      $region35: #{tpu_custom_call.1} parent=31 // pred_region
        _
      $region36: #{tpu_custom_call.1} parent=31 // pred_fallthru
        _
    $region32: #{tpu_custom_call.1} parent=5 // pred_fallthru
      _
    %p1296 = scmp.le.s32.totalorder 2, %s9
    // Predicated region
    $region37: #{tpu_custom_call.1} parent=5 // pred_check
      %p1297 = pneg %p1296
    $region38: #{tpu_custom_call.1} parent=5 // pred_check_branch
      %1299 = sbr.rel (%p1297) target = $region40
    $region39: #{tpu_custom_call.1} parent=5 // pred_region
      %s1300 = ssub.s32 %s9, 2
      // Predicated region
      $region41: #{tpu_custom_call.1} parent=39 // pred_check
        %p1301 = pneg %p106
      $region42: #{tpu_custom_call.1} parent=39 // pred_check_branch
        %1303 = sbr.rel (%p1301) target = $region44
      $region43: #{tpu_custom_call.1} parent=39 // pred_region
        %p1304 = scmp.lt.s32.totalorder %s15, 1
        %s1305 = scalar_select %p1304, %s15, 1
        %s1306 = smul.addr %s1305, 11
        %s1307 = smul.addr %s1306, 4
        %s1308 = scalar_lea.vmem %s3, %s1307
      $region44: #{tpu_custom_call.1} parent=39 // pred_fallthru
        _
    $region40: #{tpu_custom_call.1} parent=5 // pred_fallthru
      _
  $region6: #{tpu_custom_call.1} parent=0 // loop_footer
    %s13 = sadd.s32 1, %s9
  $region7: #{tpu_custom_call.1} parent=0 // loop_footer_branch
    %8 = sbr.rel target = $region3
  $region8: #{tpu_custom_call.1} parent=0 // loop_exit
    _

</llo_original>
